<compile_context>
chip_gen: v5e
topology: v5e:2x2
jax: 0.10.0
libtpu: 0.0.40
codegen_flags: <defaults>
</compile_context>

<pallas_src>
import jax
import jax.numpy as jnp
import numpy as np
from jax.experimental import pallas as pl
from jax.experimental.pallas import tpu as pltpu


def _round_up(x, m):
    return (x + m - 1) // m * m


def _cdiv(a, b):
    return -(-a // b)


def _tpu_budget():
    """(physical VMEM bytes, TensorCores per chip) with robust fallbacks."""
    vmem = None
    try:
        vmem = int(pltpu.get_tpu_info().vmem_capacity_bytes)
    except Exception:
        vmem = None
    kind = ""
    try:
        kind = jax.devices()[0].device_kind.lower()
    except Exception:
        pass
    is_v7 = ("v7" in kind) or ("7x" in kind)
    if vmem is None:
        vmem = (64 << 20) if is_v7 else (128 << 20)
    n_tc = 2 if (is_v7 or vmem <= (64 << 20)) else 1
    return vmem, n_tc


def _working_set_bytes(tn, tf, d_model, act_isz, w_isz, weight_bufs=2):
    """Estimate VMEM resident bytes for one pipelined step."""
    io = 2 * 2 * tn * d_model * act_isz                 # x + out tiles, double-buffered
    w = weight_bufs * 3 * d_model * tf * w_isz          # W1, W2, W3 tiles
    b = weight_bufs * (2 * tf + d_model) * 4            # f32 bias tiles
    acc = tn * d_model * 4                              # persistent f32 accumulator
    return io + w + b + acc


def _ff_tile_candidates(dim_ff_pad, max_tf):
    """Lane-aligned (multiple of 128) divisors of dim_ff_pad, largest first."""
    hi = min(dim_ff_pad, max(128, max_tf))
    cands = [t for t in range(128, hi + 1, 128) if dim_ff_pad % t == 0]
    if not cands:
        cands = [dim_ff_pad]
    return sorted(cands, reverse=True)


def _ffn_kernel(x_ref, w1_ref, b1_ref, w2_ref, b2_ref, w3_ref, b3_ref,
                o_ref, acc_ref):
    ff = pl.program_id(1)

    @pl.when(ff == 0)
    def _init():
        acc_ref[...] = jnp.zeros_like(acc_ref)

    x = x_ref[...]  # (tn, d_model), native dtype -> bf16 MXU fast path

    # Partial gate / value projections for this ff tile; f32 accumulation on the MXU.
    g = jnp.dot(x, w1_ref[...], preferred_element_type=jnp.float32) + b1_ref[...]
    v = jnp.dot(x, w2_ref[...], preferred_element_type=jnp.float32) + b2_ref[...]

    # SiLU(gate) * value in f32 (sigmoid runs on the EUP; filler under matmul latency).
    hidden = (g * jax.nn.sigmoid(g)) * v

    # Second projection: cast back to the weight dtype so the MXU stays on the fast
    # path; accumulation stays f32 in the persistent VMEM scratch.
    hidden = hidden.astype(w3_ref.dtype)
    acc_ref[...] += jnp.dot(hidden, w3_ref[...], preferred_element_type=jnp.float32)

    @pl.when(ff == pl.num_programs(1) - 1)
    def _finalize():
        o_ref[...] = (acc_ref[...] + b3_ref[...]).astype(o_ref.dtype)


def prepare_ffn_params(w12, b12, w3, b3, *, compute_dtype=None, ff_align=128):
    """One-time parameter prep (hoisted out of the per-call path).

    w12: (2*dim_ff, d_model), b12: (2*dim_ff,)   -- torch nn.Linear(d_model, 2*dim_ff)
    w3:  (d_model, dim_ff),   b3:  (d_model,)    -- torch nn.Linear(dim_ff, d_model)

    Weights are split into gate/value halves, pre-transposed, cast to `compute_dtype`
    (pass jnp.bfloat16 for the bf16 MXU fast path), and dim_ff is zero-padded up to a
    multiple of `ff_align` so ff tiling never falls back to full-panel-resident tiles.
    Biases stay f32 (they add into f32 accumulators in-kernel).
    """
    dim_ff = w3.shape[-1]
    if compute_dtype is None:
        compute_dtype = w12.dtype

    w1_t = jnp.asarray(w12[:dim_ff, :].T, dtype=compute_dtype)    # (d_model, dim_ff) gate
    w2_t = jnp.asarray(w12[dim_ff:, :].T, dtype=compute_dtype)    # (d_model, dim_ff) value
    w3_t = jnp.asarray(w3.T, dtype=compute_dtype)                 # (dim_ff, d_model)
    b1 = jnp.asarray(b12[:dim_ff], jnp.float32).reshape(1, -1)    # (1, dim_ff)
    b2 = jnp.asarray(b12[dim_ff:], jnp.float32).reshape(1, -1)    # (1, dim_ff)
    b3_2d = jnp.asarray(b3, jnp.float32).reshape(1, -1)           # (1, d_model)

    dim_ff_pad = _round_up(dim_ff, ff_align)
    if dim_ff_pad != dim_ff:
        pad = dim_ff_pad - dim_ff
        w1_t = jnp.pad(w1_t, ((0, 0), (0, pad)))
        w2_t = jnp.pad(w2_t, ((0, 0), (0, pad)))
        w3_t = jnp.pad(w3_t, ((0, pad), (0, 0)))   # zero rows -> padded cols contribute 0
        b1 = jnp.pad(b1, ((0, 0), (0, pad)))
        b2 = jnp.pad(b2, ((0, 0), (0, pad)))

    return w1_t, b1, w2_t, b2, w3_t, b3_2d


def feed_forward(x, params, *, row_tile=None, ff_tile=512):
    """x: (..., d_model). params from prepare_ffn_params. Returns same shape as x."""
    w1_t, b1, w2_t, b2, w3_t, b3 = params
    d_model = x.shape[-1]
    dim_ff_pad = w1_t.shape[-1]
    orig_shape = x.shape

    x2d = x.reshape(-1, d_model)
    n = x2d.shape[0]

    act_isz = jnp.dtype(x.dtype).itemsize
    w_isz = jnp.dtype(w1_t.dtype).itemsize
    sublane = 16 if act_isz == 2 else 8

    vmem_phys, n_tc = _tpu_budget()
    # Leave headroom for internal scratch / spills; never claim more than 100 MiB.
    vmem_cap = min(int(vmem_phys * 0.9), 100 << 20)

    if row_tile is None:
        # 512 rows is past the bf16 roofline crossover on v5e/v6e (~240 / ~670 FLOP/byte);
        # v7x only needs ~311 FLOP/byte but has half the VMEM, so start at 384.
        row_tile = 384 if vmem_phys <= (64 << 20) else 512

    tn = min(row_tile, _round_up(n, sublane))

    # Keep the "parallel" row axis wide enough to feed every TensorCore (v7x: 2 TCs).
    if n_tc > 1 and _cdiv(n, tn) < n_tc and n > sublane:
        tn = max(sublane, _round_up(_cdiv(n, n_tc), sublane))

    # Largest lane-aligned ff tile whose double-buffered working set fits the budget;
    # shrink the row tile if even tf=128 does not fit.
    tf_cands = _ff_tile_candidates(dim_ff_pad, ff_tile)
    while True:
        tf = next((t for t in tf_cands
                   if _working_set_bytes(tn, t, d_model, act_isz, w_isz) <= vmem_cap),
                  None)
        if tf is not None or tn <= sublane:
            if tf is None:
                tf = tf_cands[-1]
            break
        tn = max(sublane, _round_up(tn // 2, sublane))

    n_pad = _round_up(n, tn)
    if n_pad != n:
        x2d = jnp.pad(x2d, ((0, n_pad - n), (0, 0)))

    n_row_tiles = n_pad // tn
    n_ff_tiles = dim_ff_pad // tf
    grid = (n_row_tiles, n_ff_tiles)

    # Deeper weight pipelining only pays when weights are streamed exactly once
    # (single row tile -> no reuse to hide latency behind) and there are enough ff steps.
    ws = _working_set_bytes(tn, tf, d_model, act_isz, w_isz)
    ws3 = _working_set_bytes(tn, tf, d_model, act_isz, w_isz, weight_bufs=3)
    deep_weights = (n_row_tiles == 1) and (n_ff_tiles >= 3) and (ws3 <= vmem_cap)
    w_buf_mode = dict(pipeline_mode=pl.Buffered(3)) if deep_weights else {}
    if deep_weights:
        ws = ws3

    vmem_limit = int(min(vmem_cap, max(32 << 20, 2 * ws)))

    # Weights are re-streamed once per row tile -> multiply weight bytes accordingly.
    cost = pl.CostEstimate(
        flops=int(6 * n_pad * d_model * dim_ff_pad),
        transcendentals=int(n_pad * dim_ff_pad),
        bytes_accessed=int(
            2 * n_pad * d_model * act_isz
            + n_row_tiles * 3 * d_model * dim_ff_pad * w_isz
            + n_row_tiles * (2 * dim_ff_pad + d_model) * 4),
    )

    out2d = pl.pallas_call(
        _ffn_kernel,
        out_shape=jax.ShapeDtypeStruct((n_pad, d_model), x.dtype),
        grid_spec=pltpu.PrefetchScalarGridSpec(
            num_scalar_prefetch=0,
            grid=grid,
            in_specs=[
                pl.BlockSpec((tn, d_model), lambda i, f: (i, 0)),                # x rows
                pl.BlockSpec((d_model, tf), lambda i, f: (0, f), **w_buf_mode),  # W1^T (gate)
                pl.BlockSpec((1, tf),       lambda i, f: (0, f)),                # b1
                pl.BlockSpec((d_model, tf), lambda i, f: (0, f), **w_buf_mode),  # W2^T (value)
                pl.BlockSpec((1, tf),       lambda i, f: (0, f)),                # b2
                pl.BlockSpec((tf, d_model), lambda i, f: (f, 0), **w_buf_mode),  # W3^T
                pl.BlockSpec((1, d_model),  lambda i, f: (0, 0)),                # b3
            ],
            out_specs=pl.BlockSpec((tn, d_model), lambda i, f: (i, 0)),
            scratch_shapes=[pltpu.VMEM((tn, d_model), jnp.float32)],             # f32 acc
        ),
        compiler_params=pltpu.CompilerParams(
            dimension_semantics=("parallel", "arbitrary"),
            vmem_limit_bytes=vmem_limit),
        cost_estimate=cost,
    )(x2d, w1_t, b1, w2_t, b2, w3_t, b3)

    if n_pad != n:
        out2d = out2d[:n]
    return out2d.reshape(orig_shape)


def _init_linear(key, out_features, in_features, dtype=jnp.float32):
    """Deterministic init mimicking torch.nn.Linear (uniform +-1/sqrt(fan_in))."""
    kw, kb = jax.random.split(key)
    bound = 1.0 / jnp.sqrt(in_features)
    w = jax.random.uniform(kw, (out_features, in_features), dtype, -bound, bound)
    b = jax.random.uniform(kb, (out_features,), dtype, -bound, bound)
    return w, b


if __name__ == "__main__":
    batch, seq, d_model, dim_ff = 2, 8, 32, 64

    root = jax.random.PRNGKey(0)
    kx, k12, k3 = jax.random.split(root, 3)

    x = jax.random.normal(kx, (batch, seq, d_model), dtype=jnp.float32)
    w12, b12 = _init_linear(k12, 2 * dim_ff, d_model)   # nn.Linear(d_model, dim_ff*2)
    w3, b3 = _init_linear(k3, d_model, dim_ff)          # nn.Linear(dim_ff, d_model)

    # float64 reference on host (numpy) -- unambiguous ground truth.
    xn = np.asarray(x, np.float64)
    w12n, b12n = np.asarray(w12, np.float64), np.asarray(b12, np.float64)
    w3n, b3n = np.asarray(w3, np.float64), np.asarray(b3, np.float64)
    h = xn @ w12n.T + b12n
    gate_r, value_r = h[..., :dim_ff], h[..., dim_ff:]
    ref = (gate_r * (1.0 / (1.0 + np.exp(-gate_r))) * value_r) @ w3n.T + b3n

    # f32 path.
    params_f32 = prepare_ffn_params(w12, b12, w3, b3)
    out = feed_forward(x, params_f32)
    jax.block_until_ready(out)
    assert out.shape == x.shape
    assert np.allclose(np.asarray(out, np.float64), ref, atol=5e-3, rtol=5e-3)

    # bf16 fast path (weights stored in the activation dtype, per perf review).
    params_bf16 = prepare_ffn_params(w12, b12, w3, b3, compute_dtype=jnp.bfloat16)
    out_bf16 = feed_forward(x.astype(jnp.bfloat16), params_bf16)
    jax.block_until_ready(out_bf16)
    assert out_bf16.shape == x.shape
    assert np.allclose(np.asarray(out_bf16, np.float64), ref, atol=1e-1, rtol=1e-1)

    print("KERNEL_OK")
</pallas_src>

<mosaic_0001>
module attributes {stable_mosaic.version = 11 : i64} {
  func.func @_ffn_kernel(%arg0: i32, %arg1: i32, %arg2: memref<16x32xf32, #tpu.memory_space<vmem>>, %arg3: memref<32x128xf32, #tpu.memory_space<vmem>>, %arg4: memref<1x128xf32, #tpu.memory_space<vmem>>, %arg5: memref<32x128xf32, #tpu.memory_space<vmem>>, %arg6: memref<1x128xf32, #tpu.memory_space<vmem>>, %arg7: memref<128x32xf32, #tpu.memory_space<vmem>>, %arg8: memref<1x32xf32, #tpu.memory_space<vmem>>, %arg9: memref<16x32xf32, #tpu.memory_space<vmem>>, %arg10: memref<16x32xf32, #tpu.memory_space<vmem>>) attributes {dimension_semantics = [#tpu.dimension_semantics<parallel>, #tpu.dimension_semantics<arbitrary>], iteration_bounds = array<i64: 1, 1>, scalar_prefetch = 0 : i64, scratch_operands = 1 : i64, tpu.core_type = #tpu.core_type<tc>, window_params = [{transform_indices = @transform_0, window_bounds = array<i64: 16, 32>}, {transform_indices = @transform_1, window_bounds = array<i64: 32, 128>}, {transform_indices = @transform_2, window_bounds = array<i64: 1, 128>}, {transform_indices = @transform_3, window_bounds = array<i64: 32, 128>}, {transform_indices = @transform_4, window_bounds = array<i64: 1, 128>}, {transform_indices = @transform_5, window_bounds = array<i64: 128, 32>}, {pipeline_mode = #tpu.pipeline_mode<synchronous>, transform_indices = @transform_6, window_bounds = array<i64: 1, 32>}, {transform_indices = @transform_7, window_bounds = array<i64: 16, 32>}]} {
    %c0_i32 = arith.constant 0 : i32
    %0 = arith.cmpi eq, %arg1, %c0_i32 : i32
    %1 = arith.extui %0 : i1 to i32
    %c0_i32_0 = arith.constant 0 : i32
    %2 = arith.cmpi ne, %1, %c0_i32_0 : i32
    scf.if %2 {
      %cst_21 = arith.constant 0.000000e+00 : f32
      %29 = vector.broadcast %cst_21 : f32 to vector<16x32xf32>
      %c0_22 = arith.constant 0 : index
      %c0_23 = arith.constant 0 : index
      %30 = vector.load %arg10[%c0_22, %c0_23] : memref<16x32xf32, #tpu.memory_space<vmem>>, vector<16x32xf32>
      tpu.vector_store %arg10[%c0_22, %c0_23], %29 {strides = array<i32>} : memref<16x32xf32, #tpu.memory_space<vmem>>, vector<16x32xf32>,
    } else {
    }
    %c0 = arith.constant 0 : index
    %c0_1 = arith.constant 0 : index
    %3 = vector.load %arg2[%c0, %c0_1] : memref<16x32xf32, #tpu.memory_space<vmem>>, vector<16x32xf32>
    %c0_2 = arith.constant 0 : index
    %c0_3 = arith.constant 0 : index
    %4 = vector.load %arg3[%c0_2, %c0_3] : memref<32x128xf32, #tpu.memory_space<vmem>>, vector<32x128xf32>
    %cst = arith.constant dense<0.000000e+00> : vector<16x128xf32>
    %5 = tpu.matmul %3, %4, %cst {dimension_numbers = #tpu.dot_dimension_numbers<[1], [0], [0], [1], [0, 0, 1, 1], [], []>} : vector<16x32xf32>, vector<32x128xf32>, vector<16x128xf32> -> vector<16x128xf32>
    %c0_4 = arith.constant 0 : index
    %c0_5 = arith.constant 0 : index
    %6 = vector.load %arg4[%c0_4, %c0_5] : memref<1x128xf32, #tpu.memory_space<vmem>>, vector<1x128xf32>
    %7 = vector.broadcast %6 : vector<1x128xf32> to vector<16x128xf32>
    %8 = arith.addf %5, %7 : vector<16x128xf32>
    %c0_6 = arith.constant 0 : index
    %c0_7 = arith.constant 0 : index
    %9 = vector.load %arg5[%c0_6, %c0_7] : memref<32x128xf32, #tpu.memory_space<vmem>>, vector<32x128xf32>
    %cst_8 = arith.constant dense<0.000000e+00> : vector<16x128xf32>
    %10 = tpu.matmul %3, %9, %cst_8 {dimension_numbers = #tpu.dot_dimension_numbers<[1], [0], [0], [1], [0, 0, 1, 1], [], []>} : vector<16x32xf32>, vector<32x128xf32>, vector<16x128xf32> -> vector<16x128xf32>
    %c0_9 = arith.constant 0 : index
    %c0_10 = arith.constant 0 : index
    %11 = vector.load %arg6[%c0_9, %c0_10] : memref<1x128xf32, #tpu.memory_space<vmem>>, vector<1x128xf32>
    %12 = vector.broadcast %11 : vector<1x128xf32> to vector<16x128xf32>
    %13 = arith.addf %10, %12 : vector<16x128xf32>
    %14 = arith.negf %8 : vector<16x128xf32>
    %15 = math.exp %14 : vector<16x128xf32>
    %cst_11 = arith.constant 1.000000e+00 : f32
    %16 = vector.broadcast %cst_11 : f32 to vector<16x128xf32>
    %17 = arith.addf %16, %15 : vector<16x128xf32>
    %18 = arith.divf %16, %17 : vector<16x128xf32>
    %19 = arith.mulf %8, %18 : vector<16x128xf32>
    %20 = arith.mulf %19, %13 : vector<16x128xf32>
    %c0_12 = arith.constant 0 : index
    %c0_13 = arith.constant 0 : index
    %21 = vector.load %arg10[%c0_12, %c0_13] : memref<16x32xf32, #tpu.memory_space<vmem>>, vector<16x32xf32>
    %c0_14 = arith.constant 0 : index
    %c0_15 = arith.constant 0 : index
    %22 = vector.load %arg7[%c0_14, %c0_15] : memref<128x32xf32, #tpu.memory_space<vmem>>, vector<128x32xf32>
    %cst_16 = arith.constant dense<0.000000e+00> : vector<16x32xf32>
    %23 = tpu.matmul %20, %22, %cst_16 {dimension_numbers = #tpu.dot_dimension_numbers<[1], [0], [0], [1], [0, 0, 1, 1], [], []>} : vector<16x128xf32>, vector<128x32xf32>, vector<16x32xf32> -> vector<16x32xf32>
    %24 = arith.addf %21, %23 : vector<16x32xf32>
    %c0_17 = arith.constant 0 : index
    %c0_18 = arith.constant 0 : index
    %25 = vector.load %arg10[%c0_17, %c0_18] : memref<16x32xf32, #tpu.memory_space<vmem>>, vector<16x32xf32>
    tpu.vector_store %arg10[%c0_17, %c0_18], %24 {strides = array<i32>} : memref<16x32xf32, #tpu.memory_space<vmem>>, vector<16x32xf32>,
    %c0_i32_19 = arith.constant 0 : i32
    %26 = arith.cmpi eq, %arg1, %c0_i32_19 : i32
    %27 = arith.extui %26 : i1 to i32
    %c0_i32_20 = arith.constant 0 : i32
    %28 = arith.cmpi ne, %27, %c0_i32_20 : i32
    scf.if %28 {
      %c0_21 = arith.constant 0 : index
      %c0_22 = arith.constant 0 : index
      %29 = vector.load %arg10[%c0_21, %c0_22] : memref<16x32xf32, #tpu.memory_space<vmem>>, vector<16x32xf32>
      %c0_23 = arith.constant 0 : index
      %c0_24 = arith.constant 0 : index
      %30 = vector.load %arg8[%c0_23, %c0_24] : memref<1x32xf32, #tpu.memory_space<vmem>>, vector<1x32xf32>
      %31 = vector.broadcast %30 : vector<1x32xf32> to vector<16x32xf32>
      %32 = arith.addf %29, %31 : vector<16x32xf32>
      %c0_25 = arith.constant 0 : index
      %c0_26 = arith.constant 0 : index
      %33 = vector.load %arg9[%c0_25, %c0_26] : memref<16x32xf32, #tpu.memory_space<vmem>>, vector<16x32xf32>
      tpu.vector_store %arg9[%c0_25, %c0_26], %32 {strides = array<i32>} : memref<16x32xf32, #tpu.memory_space<vmem>>, vector<16x32xf32>,
    } else {
    }
    return
  }
  func.func @transform_0(%arg0: i32, %arg1: i32) -> (i32, i32) {
    %c0_i32 = arith.constant 0 : i32
    %c0_i32_0 = arith.constant 0 : i32
    return %arg0, %c0_i32 : i32, i32
  }
  func.func @transform_1(%arg0: i32, %arg1: i32) -> (i32, i32) {
    %c0_i32 = arith.constant 0 : i32
    %c0_i32_0 = arith.constant 0 : i32
    return %c0_i32, %arg1 : i32, i32
  }
  func.func @transform_2(%arg0: i32, %arg1: i32) -> (i32, i32) {
    %c0_i32 = arith.constant 0 : i32
    %c0_i32_0 = arith.constant 0 : i32
    return %c0_i32, %arg1 : i32, i32
  }
  func.func @transform_3(%arg0: i32, %arg1: i32) -> (i32, i32) {
    %c0_i32 = arith.constant 0 : i32
    %c0_i32_0 = arith.constant 0 : i32
    return %c0_i32, %arg1 : i32, i32
  }
  func.func @transform_4(%arg0: i32, %arg1: i32) -> (i32, i32) {
    %c0_i32 = arith.constant 0 : i32
    %c0_i32_0 = arith.constant 0 : i32
    return %c0_i32, %arg1 : i32, i32
  }
  func.func @transform_5(%arg0: i32, %arg1: i32) -> (i32, i32) {
    %c0_i32 = arith.constant 0 : i32
    %c0_i32_0 = arith.constant 0 : i32
    return %arg1, %c0_i32 : i32, i32
  }
  func.func @transform_6(%arg0: i32, %arg1: i32) -> (i32, i32) {
    %c0_i32 = arith.constant 0 : i32
    %c0_i32_0 = arith.constant 0 : i32
    %c0_i32_1 = arith.constant 0 : i32
    return %c0_i32, %c0_i32_0 : i32, i32
  }
  func.func @transform_7(%arg0: i32, %arg1: i32) -> (i32, i32) {
    %c0_i32 = arith.constant 0 : i32
    %c0_i32_0 = arith.constant 0 : i32
    return %arg0, %c0_i32 : i32, i32
  }
}

</mosaic_0001>

<llo_original>
// kernel: tpu_custom_call.1
$region0: #{tpu_custom_call.1}
  #allocation0 [shape = 'u32[]', space=smem, size = 0x4, offset = 0x4, fixed_abs, tag = 'smem constant byte address 0x4 - core index']
  #allocation1 [shape = 'u32[72,128]{1,0:T(1,128)}', space=vmem, size = 0x9000, scoped, tag = 'internal scratch']
  #allocation2 [shape = 'f32[16,32]{1,0:T(8,128)}', space=vmem, size = 0x2000, scoped, tag = 'scratch operand']
  %s0 = inlined_call_operand.vmem [shape: f32[16,32], index: 0, kind: input, shape index: {}]
  %s1 = inlined_call_operand.vmem [shape: f32[32,128], index: 1, kind: input, shape index: {}]
  %s2 = inlined_call_operand.vmem [shape: f32[1,128], index: 2, kind: input, shape index: {}]
  %s3 = inlined_call_operand.vmem [shape: f32[32,128], index: 3, kind: input, shape index: {}]
  %s4 = inlined_call_operand.vmem [shape: f32[1,128], index: 4, kind: input, shape index: {}]
  %s5 = inlined_call_operand.vmem [shape: f32[128,32], index: 5, kind: input, shape index: {}]
  %s6 = inlined_call_operand.vmem [shape: f32[1,32], index: 6, kind: input, shape index: {}]
  %s7 = inlined_call_operand.hbm [shape: f32[16,32], index: 7, kind: output, shape index: {}]
  %s8 = sld [smem:[#allocation0]]
  $region46: #{tpu_custom_call.1} parent=0
    _
  %s10 = ssub.s32 1, %s8
  %s11 = scalar_select 0, %s10, %s8
  $region1: #{tpu_custom_call.1} parent=0
    #allocation3 [shape = 'u8[8192]{0}', space=vmem, size = 0x2000, scoped, tag = 'output window, operand 0, single buffered']
    #allocation4 [shape = 's32[1]{0}', space=sflag, size = 0x4, scoped, tag = 'scoped memory for tpu_custom_call.1']
    %12 = vsyncpa [#allocation4], 0
    // Predicated region
    $region2: #{tpu_custom_call.1} parent=1 // pred_check
      _
    $region3: #{tpu_custom_call.1} parent=1 // pred_check_branch
      %14 = sbr.rel (0) target = $region5
    $region4: #{tpu_custom_call.1} parent=1 // pred_region
      _
    $region5: #{tpu_custom_call.1} parent=1 // pred_fallthru
      _
    // Predicated region
    $region6: #{tpu_custom_call.1} parent=1 // pred_check
      _
    $region7: #{tpu_custom_call.1} parent=1 // pred_check_branch
      %16 = sbr.rel (0) target = $region9
    $region8: #{tpu_custom_call.1} parent=1 // pred_region
      _
    $region9: #{tpu_custom_call.1} parent=1 // pred_fallthru
      _
    // Predicated region
    $region10: #{tpu_custom_call.1} parent=1 // pred_check
      _
    $region11: #{tpu_custom_call.1} parent=1 // pred_check_branch
      %18 = sbr.rel (0) target = $region13
    $region12: #{tpu_custom_call.1} parent=1 // pred_region
      _
    $region13: #{tpu_custom_call.1} parent=1 // pred_fallthru
      _
    // Predicated region
    $region14: #{tpu_custom_call.1} parent=1 // pred_check
      _
    $region15: #{tpu_custom_call.1} parent=1 // pred_check_branch
      %20 = sbr.rel (0) target = $region17
    $region16: #{tpu_custom_call.1} parent=1 // pred_region
      _
    $region17: #{tpu_custom_call.1} parent=1 // pred_fallthru
      _
    // Predicated region
    $region18: #{tpu_custom_call.1} parent=1 // pred_check
      _
    $region19: #{tpu_custom_call.1} parent=1 // pred_check_branch
      %22 = sbr.rel (0) target = $region21
    $region20: #{tpu_custom_call.1} parent=1 // pred_region
      _
    $region21: #{tpu_custom_call.1} parent=1 // pred_fallthru
      _
    // Predicated region
    $region22: #{tpu_custom_call.1} parent=1 // pred_check
      _
    $region23: #{tpu_custom_call.1} parent=1 // pred_check_branch
      %24 = sbr.rel (0) target = $region25
    $region24: #{tpu_custom_call.1} parent=1 // pred_region
      _
    $region25: #{tpu_custom_call.1} parent=1 // pred_fallthru
      _
    // Predicated region
    $region26: #{tpu_custom_call.1} parent=1 // pred_check
      _
    $region27: #{tpu_custom_call.1} parent=1 // pred_check_branch
      %26 = sbr.rel (0) target = $region29
    $region28: #{tpu_custom_call.1} parent=1 // pred_region
      _
    $region29: #{tpu_custom_call.1} parent=1 // pred_fallthru
      _
    %p27 = scmp.eq.s32.totalorder 0, 0
    // Predicated region
    $region30: #{tpu_custom_call.1} parent=1 // pred_check
      %p28 = pneg %p27
    $region31: #{tpu_custom_call.1} parent=1 // pred_check_branch
      %30 = sbr.rel (%p28) target = $region33
    $region32: #{tpu_custom_call.1} parent=1 // pred_region
      %vm31 = vcmask 261120
      %32 = vst.msk [vmem:[#allocation2] sm:$0xff] %vm31, 0.0
      %33 = vst.msk [vmem:[#allocation2 + $0x8] sm:$0xff] %vm31, 0.0
    $region33: #{tpu_custom_call.1} parent=1 // pred_fallthru
      _
    %v34 = vld [vmem:[%s0] sm:$0xff]
    %v35 = vld [vmem:[%s0 + $0x8] sm:$0xff]
    %v36 = vld [vmem:[%s1] sm:$0xff]
    %v37 = vld [vmem:[%s1 + $0x8] sm:$0xff]
    %v38 = vld [vmem:[%s1 + $0x10] sm:$0xff]
    %v39 = vld [vmem:[%s1 + $0x18] sm:$0xff]
    %v40 = vld [vmem:[%s2] sm:$0x1]
    %v42 = vperm.slane %v40, 0
    %vm44 = vcmask 261120
    %v46 = vsel %vm44, %v34, 0
    %v49 = vsel %vm44, %v35, 0
    %51 = vmatpush.msra.mxu0 0.0
    %52 = vmatpush.msra.mxu0 0.0
    %53 = vmatpush.msra.mxu0 0.0
    %54 = vmatpush.msra.mxu0 0.0
    %55 = vmatpush.msra.mxu0 0.0
    %56 = vmatpush.msra.mxu0 0.0
    %57 = vmatpush.msra.mxu0 0.0
    %58 = vmatpush.msra.mxu0 0.0
    %59 = vmatpush.msra.mxu0 0.0
    %60 = vmatpush.msra.mxu0 0.0
    %61 = vmatpush.msra.mxu0 0.0
    %62 = vmatpush.msra.mxu0 0.0
    %63 = vmatpush.msra.mxu0 %v39
    %64 = vmatpush.msra.mxu0 %v38
    %65 = vmatpush.msra.mxu0 %v37
    %66 = vmatpush.msra.mxu0 %v36
    %67 = vmatmul.f32.gmra.mxu0 %v46
    %v68 = vpop.f32.mrf.mxu0
    %v69 = vadd.f32 %v42, %v68
    %70 = vmatmul.f32.gmra.mxu0 %v49
    %v71 = vpop.f32.mrf.mxu0
    %v72 = vadd.f32 %v42, %v71
    %73 = vdwg.mxu0
    %v74 = vld [vmem:[%s3] sm:$0xff]
    %v75 = vld [vmem:[%s3 + $0x8] sm:$0xff]
    %v76 = vld [vmem:[%s3 + $0x10] sm:$0xff]
    %v77 = vld [vmem:[%s3 + $0x18] sm:$0xff]
    %v78 = vld [vmem:[%s4] sm:$0x1]
    %v80 = vperm.slane %v78, 0
    %82 = vmatpush.msra.mxu0 0.0
    %83 = vmatpush.msra.mxu0 0.0
    %84 = vmatpush.msra.mxu0 0.0
    %85 = vmatpush.msra.mxu0 0.0
    %86 = vmatpush.msra.mxu0 0.0
    %87 = vmatpush.msra.mxu0 0.0
    %88 = vmatpush.msra.mxu0 0.0
    %89 = vmatpush.msra.mxu0 0.0
    %90 = vmatpush.msra.mxu0 0.0
    %91 = vmatpush.msra.mxu0 0.0
    %92 = vmatpush.msra.mxu0 0.0
    %93 = vmatpush.msra.mxu0 0.0
    %94 = vmatpush.msra.mxu0 %v77
    %95 = vmatpush.msra.mxu0 %v76
    %96 = vmatpush.msra.mxu0 %v75
    %97 = vmatpush.msra.mxu0 %v74
    %98 = vmatmul.f32.gmra.mxu0 %v46
    %v99 = vpop.f32.mrf.mxu0
    %v100 = vadd.f32 %v80, %v99
    %101 = vmatmul.f32.gmra.mxu0 %v49
    %v102 = vpop.f32.mrf.mxu0
    %v103 = vadd.f32 %v80, %v102
    %104 = vdwg.mxu0
    %v105 = vxor.u32 %v69, 2147483648
    %v106 = vxor.u32 %v72, 2147483648
    %v107 = vmul.f32 %v105, 1.442695
    %v108 = vpow.pop %v107
    %v109 = vmul.f32 %v106, 1.442695
    %v110 = vpow.pop %v109
    %v111 = vadd.f32 %v108, 1.0
    %v112 = vadd.f32 %v110, 1.0
    %v113 = vrcp.pop %v111
    %v114 = vmul.f32 %v111, %v113
    %v115 = vsub.f32 1.0, %v114
    %v116 = vmul.f32 %v113, %v115
    %v117 = vadd.f32 %v113, %v116
    %vm118 = vweird.f32 %v111
    %vm119 = vweird.f32 %v113
    %vm120 = vmor %vm118, %vm119
    %v121 = vsel %vm120, %v113, %v117
    %v122 = vand.u32 2147483647, %v111
    %vm123 = vcmp.eq.f32.partialorder %v122, 8.507059e+37
    %v124 = vand.u32 %v111, 2147483648
    %v125 = vor.u32 1.1754944e-38, %v124
    %v126 = vsel %vm123, %v125, %v121
    %v127 = vmul.f32 1.0, %v126
    %v128 = vrcp.pop %v112
    %v129 = vmul.f32 %v112, %v128
    %v130 = vsub.f32 1.0, %v129
    %v131 = vmul.f32 %v128, %v130
    %v132 = vadd.f32 %v128, %v131
    %vm133 = vweird.f32 %v112
    %vm134 = vweird.f32 %v128
    %vm135 = vmor %vm133, %vm134
    %v136 = vsel %vm135, %v128, %v132
    %v137 = vand.u32 2147483647, %v112
    %vm138 = vcmp.eq.f32.partialorder %v137, 8.507059e+37
    %v139 = vand.u32 %v112, 2147483648
    %v140 = vor.u32 1.1754944e-38, %v139
    %v141 = vsel %vm138, %v140, %v136
    %v142 = vmul.f32 1.0, %v141
    %v143 = vmul.f32 %v69, %v127
    %v144 = vmul.f32 %v72, %v142
    %v145 = vmul.f32 %v143, %v100
    %v146 = vmul.f32 %v144, %v103
    %v147 = vld [vmem:[#allocation2] sm:$0xff]
    %v148 = vld [vmem:[#allocation2 + $0x8] sm:$0xff]
    %v149 = vld [vmem:[%s5] sm:$0xff]
    %v150 = vld [vmem:[%s5 + $0x8] sm:$0xff]
    %v151 = vld [vmem:[%s5 + $0x10] sm:$0xff]
    %v152 = vld [vmem:[%s5 + $0x18] sm:$0xff]
    %v153 = vld [vmem:[%s5 + $0x20] sm:$0xff]
    %v154 = vld [vmem:[%s5 + $0x28] sm:$0xff]
    %v155 = vld [vmem:[%s5 + $0x30] sm:$0xff]
    %v156 = vld [vmem:[%s5 + $0x38] sm:$0xff]
    %v157 = vld [vmem:[%s5 + $0x40] sm:$0xff]
    %v158 = vld [vmem:[%s5 + $0x48] sm:$0xff]
    %v159 = vld [vmem:[%s5 + $0x50] sm:$0xff]
    %v160 = vld [vmem:[%s5 + $0x58] sm:$0xff]
    %v161 = vld [vmem:[%s5 + $0x60] sm:$0xff]
    %v162 = vld [vmem:[%s5 + $0x68] sm:$0xff]
    %v163 = vld [vmem:[%s5 + $0x70] sm:$0xff]
    %v164 = vld [vmem:[%s5 + $0x78] sm:$0xff]
    %165 = vmatpush.msra.mxu0 %v164
    %166 = vmatpush.msra.mxu0 %v163
    %167 = vmatpush.msra.mxu0 %v162
    %168 = vmatpush.msra.mxu0 %v161
    %169 = vmatpush.msra.mxu0 %v160
    %170 = vmatpush.msra.mxu0 %v159
    %171 = vmatpush.msra.mxu0 %v158
    %172 = vmatpush.msra.mxu0 %v157
    %173 = vmatpush.msra.mxu0 %v156
    %174 = vmatpush.msra.mxu0 %v155
    %175 = vmatpush.msra.mxu0 %v154
    %176 = vmatpush.msra.mxu0 %v153
    %177 = vmatpush.msra.mxu0 %v152
    %178 = vmatpush.msra.mxu0 %v151
    %179 = vmatpush.msra.mxu0 %v150
    %180 = vmatpush.msra.mxu0 %v149
    %181 = vmatmul.f32.gmra.mxu0 %v145
    %v182 = vpop.f32.mrf.mxu0
    %v183 = vadd.f32 0.0, %v182
    %184 = vmatmul.f32.gmra.mxu0 %v146
    %v185 = vpop.f32.mrf.mxu0
    %v186 = vadd.f32 0.0, %v185
    %187 = vdwg.mxu0
    %v188 = vadd.f32 %v147, %v183
    %v189 = vadd.f32 %v148, %v186
    %190 = vst.msk [vmem:[#allocation2] sm:$0xff] %vm44, %v188
    %191 = vst.msk [vmem:[#allocation2 + $0x8] sm:$0xff] %vm44, %v189
    // Predicated region
    $region34: #{tpu_custom_call.1} parent=1 // pred_check
      %p192 = pneg %p27
    $region35: #{tpu_custom_call.1} parent=1 // pred_check_branch
      %194 = sbr.rel (%p192) target = $region37
    $region36: #{tpu_custom_call.1} parent=1 // pred_region
      %v195 = vld [vmem:[#allocation2] sm:$0xff]
      %v196 = vld [vmem:[#allocation2 + $0x8] sm:$0xff]
      %v197 = vld [vmem:[%s6] sm:$0x1]
      %v199 = vperm.slane %v197, 0
      %v201 = vadd.f32 %v195, %v199
      %v202 = vadd.f32 %v196, %v199
      %203 = vst.msk [vmem:[#allocation3] sm:$0xff] %vm44, %v201
      %204 = vst.msk [vmem:[#allocation3 + $0x8] sm:$0xff] %vm44, %v202
    $region37: #{tpu_custom_call.1} parent=1 // pred_fallthru
      _
    // Predicated region
    $region38: #{tpu_custom_call.1} parent=1 // pred_check
      _
    $region39: #{tpu_custom_call.1} parent=1 // pred_check_branch
      %206 = sbr.rel (0) target = $region41
    $region40: #{tpu_custom_call.1} parent=1 // pred_region
      %208 = vsyncadd [#allocation4], 0
      %s209 = sshll.u32 [#allocation3], 4
      %s210 = int_to_ptr.vmem [resolvable:$true] %s209
      %s211 = sshll.u32 %s7, 4
      %s212 = int_to_ptr.hbm [resolvable:$true] %s211
      %217 = dma.vmem_to_hbm [thread:$0]  %s210, 256, %s212, [#allocation4], 128, 128, 8
    $region41: #{tpu_custom_call.1} parent=1 // pred_fallthru
      _
    // Predicated region
    $region42: #{tpu_custom_call.1} parent=1 // pred_check
      _
    $region43: #{tpu_custom_call.1} parent=1 // pred_check_branch
      %219 = sbr.rel (0) target = $region45
    $region44: #{tpu_custom_call.1} parent=1 // pred_region
      %221 = dma.done [#allocation4], 256
    $region45: #{tpu_custom_call.1} parent=1 // pred_fallthru
      _
    %222 = vsyncpa [#allocation4], 1

</llo_original>
